<compile_context>
chip_gen: v5e
topology: v5e:2x2
jax: 0.10.0
libtpu: 0.0.40
codegen_flags: <defaults>
</compile_context>

<pallas_src>
import functools

import numpy as np
import jax
import jax.numpy as jnp
from jax.experimental import pallas as pl
from jax.experimental.pallas import tpu as pltpu

_BN_EPS = 1e-5
_CHANS = [(512, 256), (256, 128), (128, 64), (64, 32), (32, 16)]   # layer1..layer5
_LAYER_G = (1, 1, 1, 2, 4)      # column-group factor per residual layer (G*Ci >= 128)
_LIN_G = 8                      # final layer; Co padded 3->4 so N = 8*4*4 = 128
_LIN_CO_PAD = 4
_OUT_CH = 3


def _device_kind():
    try:
        return jax.devices()[0].device_kind.lower()
    except Exception:
        return ""


_KIND = _device_kind()
_SINGLE_TC = ("v5" in _KIND) or ("v6" in _KIND)          # 1 TensorCore / chip
_VMEM_LIMIT = (64 if _SINGLE_TC else 44) * 1024 * 1024   # review: <=~44MiB on v7x


# ----------------------------- plain GEMM kernel (fc / conv1) -----------------------------

def _gemm_bias_act_kernel(a_ref, b_ref, bias_ref, o_ref, *, act):
    y = jnp.dot(a_ref[...], b_ref[...], preferred_element_type=jnp.float32)
    y = y + bias_ref[...]
    if act == "relu":
        y = jnp.maximum(y, 0.0)
    elif act == "sigmoid":
        y = jnp.clip(pl.reciprocal(1.0 + jnp.exp(-y), approx=True), 0.0, 1.0)
    o_ref[...] = y.astype(o_ref.dtype)


def _pick_tile(dim, candidates):
    for c in candidates:
        if c <= dim and dim % c == 0:
            return c
    return None


def pallas_gemm_bias_act(a, b, bias, act="none", out_dtype=jnp.bfloat16):
    """act((M,K)@(K,N) + bias[N]) on the MXU. bf16 operands, f32 accumulation."""
    M, K = a.shape
    Kb, N = b.shape
    assert K == Kb, (K, Kb)

    tm = _pick_tile(M, (512, 256, 128, 64, 32, 16))
    if tm is None:                       # tiny batch GEMMs: pad M to the bf16 granule
        Mp = ((M + 15) // 16) * 16
        a = jnp.pad(a, ((0, Mp - M), (0, 0)))
        tm = _pick_tile(Mp, (512, 256, 128, 64, 32, 16))
    else:
        Mp = M

    if N <= 512:
        tn = N
    else:
        tn = _pick_tile(N, (512, 256, 128))
        assert tn is not None, (M, K, N)

    # Only force a second grid block on multi-TensorCore chips (v7x); on v5e/v6e the
    # split is pure overhead (review).
    if (not _SINGLE_TC) and (Mp // tm) * (N // tn) == 1 and tn >= 256 and tn % 256 == 0:
        tn //= 2

    grid = (Mp // tm, N // tn)
    out = pl.pallas_call(
        functools.partial(_gemm_bias_act_kernel, act=act),
        out_shape=jax.ShapeDtypeStruct((Mp, N), out_dtype),
        grid=grid,
        in_specs=[pl.BlockSpec((tm, K), lambda i, j: (i, 0)),
                  pl.BlockSpec((K, tn), lambda i, j: (0, j)),
                  pl.BlockSpec((1, tn), lambda i, j: (0, j))],
        out_specs=pl.BlockSpec((tm, tn), lambda i, j: (i, j)),
        compiler_params=pltpu.CompilerParams(
            dimension_semantics=("parallel", "parallel"),
            vmem_limit_bytes=_VMEM_LIMIT),
    )(a.astype(jnp.bfloat16), b.astype(jnp.bfloat16),
      bias.reshape(1, N).astype(jnp.float32))
    return out if Mp == M else out[:M]


# ------------------ stride-2 deconv: in-kernel tap gather, phase-packed GEMM ------------------

# (window row/col offset, output parity) -> kernel tap index, for k=4, s=2, p=1.
_KTAP = {(0, 0): 3, (1, 0): 1, (1, 1): 2, (2, 1): 0}


def _pack_deconv_weight3(w, G):
    """w: (Ci, Co, 4, 4) torch ConvTranspose2d weight -> (3, (G+2)*Ci, G*4*Co).
    Rows (t, ci) per window row-tap u; columns (dl, py, px, co)."""
    w = np.asarray(w, np.float32)
    Ci, Co = w.shape[0], w.shape[1]
    wg = np.zeros((3, G + 2, Ci, G, 2, 2, Co), np.float32)
    for (u, py), ky in _KTAP.items():
        for (v, px), kx in _KTAP.items():
            for dl in range(G):
                wg[u, dl + v, :, dl, py, px, :] = w[:, :, ky, kx]
    return wg.reshape(3, (G + 2) * Ci, G * 4 * Co)


def _deconv_kernel(x_ref, w_ref, b_ref, o_ref, *, RH, WB, G, Ci, act):
    """One (batch, row-block) step: gathers the 3x(G+2)xCi window taps directly from
    the full-VMEM padded input and accumulates the phase-packed GEMM in f32."""
    r0 = pl.multiple_of(pl.program_id(1) * RH, RH)
    M = RH * WB
    N = o_ref.shape[-1]
    acc = jnp.zeros((M, N), jnp.float32)
    for u in range(3):                                   # window row taps
        rows = pl.ds(r0 + u, RH)
        if G == 1:
            pieces = [(x_ref[0, rows, v:v + WB, :], v * Ci) for v in range(3)]
        else:   # main part: whole group column; tail: first 2*Ci lanes of next group
            pieces = [(x_ref[0, rows, 0:WB, :], 0),
                      (x_ref[0, rows, 1:WB + 1, 0:2 * Ci], G * Ci)]
        for val, koff in pieces:
            c = val.shape[-1]
            a = val.reshape(M, c)                        # lane dim unchanged (benign)
            acc = acc + jnp.dot(a, w_ref[u, koff:koff + c, :],
                                preferred_element_type=jnp.float32)
    y = acc + b_ref[...]
    if act == "relu":
        y = jnp.maximum(y, 0.0)
    elif act == "sigmoid":
        y = jnp.clip(pl.reciprocal(1.0 + jnp.exp(-y), approx=True), 0.0, 1.0)
    o_ref[0, :, :] = y.astype(o_ref.dtype)


def _pad_group(y, G):
    """NHWC -> padded & column-grouped (B, H+2, (W+pad)/G, G*C).  Fuses (under jit)
    with the preceding un-interleave transpose into a single XLA copy."""
    B, H, W, C = y.shape
    assert W % G == 0, (W, G)
    rpad = 1 if G == 1 else G - 1
    yp = jnp.pad(y, ((0, 0), (1, 1), (1, rpad), (0, 0)))
    Wp = W + 1 + rpad
    return yp.reshape(B, H + 2, Wp // G, G * C)


def _deconv_pallas(xg, w3, bias, *, G, Ci, H, W, act, out_dtype):
    """ConvTranspose2d(k=4,s=2,p=1,bias=False) (+ fused affine/act) with in-kernel
    im2col.  xg: grouped padded input (B, H+2, WBg, G*Ci).  Returns the phase-packed
    GEMM output (B, H*WB, G*4*Co), columns ordered (dl, py, px, co)."""
    B, Hp, WBg, lanes = xg.shape
    WB = W // G
    Ku = (G + 2) * Ci
    N = w3.shape[2]
    RH = min(H, max(1, 256 // WB))            # rows of input handled per grid step
    while H % RH:
        RH //= 2
    M_blk = RH * WB
    assert M_blk % 8 == 0, (RH, WB)
    grid = (B, H // RH)

    kernel = functools.partial(_deconv_kernel, RH=RH, WB=WB, G=G, Ci=Ci, act=act)
    return pl.pallas_call(
        kernel,
        out_shape=jax.ShapeDtypeStruct((B, H * WB, N), out_dtype),
        grid=grid,
        in_specs=[
            # full padded input resident in VMEM (single DMA per batch element)
            pl.BlockSpec((1, Hp, WBg, lanes), lambda n, rb: (n, 0, 0, 0)),
            pl.BlockSpec((3, Ku, N), lambda n, rb: (0, 0, 0)),
            pl.BlockSpec((1, N), lambda n, rb: (0, 0)),
        ],
        out_specs=pl.BlockSpec((1, M_blk, N), lambda n, rb: (n, rb, 0)),
        compiler_params=pltpu.CompilerParams(
            dimension_semantics=("parallel", "parallel"),
            vmem_limit_bytes=_VMEM_LIMIT),
    )(xg, w3, bias.reshape(1, N).astype(jnp.float32))


def deconv_layer(x_nhwc, w3, bias, G, act, out_dtype=jnp.bfloat16):
    """x: (B,H,W,Ci) NHWC -> (B,2H,2W,Co) NHWC.  The trailing un-interleave and the
    next layer's _pad_group fuse into one XLA copy under jit."""
    B, H, W, Ci = x_nhwc.shape
    Co = w3.shape[2] // (4 * G)
    xg = _pad_group(x_nhwc.astype(jnp.bfloat16), G)
    packed = _deconv_pallas(xg, w3, bias, G=G, Ci=Ci, H=H, W=W, act=act,
                            out_dtype=out_dtype)
    WB = W // G
    y = packed.reshape(B, H, WB, G, 2, 2, Co)
    return jnp.transpose(y, (0, 1, 4, 2, 3, 5, 6)).reshape(B, 2 * H, 2 * W, Co)


def _deconv_reference(x, w):
    """Direct overlap-add ConvTranspose2d(k=4,s=2,p=1) in plain JAX (self-check only)."""
    N, H, W, Ci = x.shape
    Co = w.shape[1]
    y = jnp.einsum("nhwi,iokl->nhwklo", x, w)
    out = jnp.zeros((N, 2 * H + 2, 2 * W + 2, Co), jnp.float32)
    for ky in range(4):
        for kx in range(4):
            out = out.at[:, ky:ky + 2 * H:2, kx:kx + 2 * W:2, :].add(y[:, :, :, ky, kx, :])
    return out[:, 1:2 * H + 1, 1:2 * W + 1, :]


# ------------------------------- parameters ----------------------------------

def init_params(key, input_dims=1000, output_channels=_OUT_CH):
    """Random weights; BN as created by __init__ (weight=1, bias=0, mean=0, var=1) is
    folded into the GEMM weights.  Everything pre-packed / pre-cast to bf16."""
    keys = jax.random.split(key, 16)
    bn_scale = 1.0 / np.sqrt(1.0 + _BN_EPS)

    def deconv_w(k, ci, co):
        std = (2.0 / (ci * 16)) ** 0.5
        return std * jax.random.normal(k, (ci, co, 4, 4), jnp.float32)

    # fc: K padded 1000 -> 1024 (lane-aligned; extra rows are zero).
    kdim = ((input_dims + 127) // 128) * 128
    fc_w = 0.02 * jax.random.normal(keys[0], (input_dims, 512), jnp.float32)
    fc_w = jnp.pad(fc_w, ((0, kdim - input_dims), (0, 0)))
    p = {"fc_w": fc_w.astype(jnp.bfloat16),
         "fc_b": 0.01 * jax.random.normal(keys[1], (512,), jnp.float32)}

    # conv1: k=4, s=1, p=0 on a 1x1 map == plain GEMM; BN1 scale folded, ReLU fused.
    c1 = np.asarray(deconv_w(keys[2], 512, 512))                      # (Ci,Co,4,4)
    c1 = np.transpose(c1, (0, 2, 3, 1)).reshape(512, 16 * 512) * bn_scale
    p["conv1_w"] = jnp.asarray(c1, jnp.bfloat16)
    p["conv1_b"] = jnp.zeros((16 * 512,), jnp.float32)

    # layer1..layer5: main/skip deconv pair + inference BNs collapse to one weight.
    p["layers"] = []
    ki = 3
    for (ci, co), g in zip(_CHANS, _LAYER_G):
        w_main = np.asarray(deconv_w(keys[ki], ci, co))
        w_up = np.asarray(deconv_w(keys[ki + 1], ci, co))
        ki += 2
        w3 = _pack_deconv_weight3(bn_scale * (w_main + w_up), g)
        p["layers"].append({"w": jnp.asarray(w3, jnp.bfloat16),
                            "b": jnp.zeros((w3.shape[2],), jnp.float32)})

    # lin: ConvTranspose2d(16, 3, 4, 2, 1); Co padded 3 -> 4 so N = 8*4*4 = 128.
    wl = np.asarray(deconv_w(keys[ki], 16, output_channels))          # (16, 3, 4, 4)
    wl = np.pad(wl, ((0, 0), (0, _LIN_CO_PAD - output_channels), (0, 0), (0, 0)))
    w3 = _pack_deconv_weight3(wl, _LIN_G)
    p["lin_w"] = jnp.asarray(w3, jnp.bfloat16)
    p["lin_b"] = jnp.zeros((w3.shape[2],), jnp.float32)
    return p


# ------------------------------- forward pass ---------------------------------

def inv_resnet_forward(params, x):
    """x: (B, 1000) -> (B, 3, 256, 256) NCHW, matching the PyTorch module."""
    B = x.shape[0]
    kdim = params["fc_w"].shape[0]
    if x.shape[1] != kdim:
        x = jnp.pad(x, ((0, 0), (0, kdim - x.shape[1])))
    # fc (bias fused); conv1 GEMM with BN1 scale folded + ReLU fused.
    h = pallas_gemm_bias_act(x, params["fc_w"], params["fc_b"], act="none")
    h = pallas_gemm_bias_act(h, params["conv1_w"], params["conv1_b"], act="relu")
    h = h.reshape(B, 4, 4, 512)                                       # NHWC
    # layer1..layer5: fused single-GEMM residual blocks (stride-2 deconv + BN + ReLU).
    for lp, g in zip(params["layers"], _LAYER_G):
        h = deconv_layer(h, lp["w"], lp["b"], g, act="relu")
    # lin + sigmoid (fused); padded 4th channel sliced off.
    y = deconv_layer(h, params["lin_w"], params["lin_b"], _LIN_G, act="sigmoid",
                     out_dtype=jnp.float32)
    y = y[..., :_OUT_CH]
    return jnp.transpose(y, (0, 3, 1, 2))                             # NHWC -> NCHW


# ----------------------------------- main --------------------------------------

def _check_deconv(key, B, H, W, Ci, Co, G):
    """End-to-end check of the Pallas deconv path vs direct overlap-add reference."""
    kx, kw = jax.random.split(key)
    x = jax.random.normal(kx, (B, H, W, Ci), jnp.float32)
    w = 0.1 * jax.random.normal(kw, (Ci, Co, 4, 4), jnp.float32)
    ref = _deconv_reference(x.astype(jnp.bfloat16).astype(jnp.float32),
                            w.astype(jnp.bfloat16).astype(jnp.float32))
    w3 = jnp.asarray(_pack_deconv_weight3(np.asarray(w), G), jnp.bfloat16)
    got = deconv_layer(x, w3, jnp.zeros((G * 4 * Co,), jnp.float32), G,
                       act="none", out_dtype=jnp.float32)
    got = jax.block_until_ready(got)
    assert got.shape == ref.shape, (got.shape, ref.shape)
    assert bool(jnp.allclose(got, ref, atol=3e-2, rtol=3e-2)), \
        (G, float(jnp.max(jnp.abs(got - ref))))


if __name__ == "__main__":
    key = jax.random.PRNGKey(0)
    kp, kx, kc = jax.random.split(key, 3)

    # Self-checks covering both kernel gather branches (G=1 and G>=2), batch>1 grids
    # and multi-row-block grids (the configs production layers actually use).
    _check_deconv(jax.random.fold_in(kc, 0), B=1, H=8, W=8, Ci=32, Co=16, G=1)
    _check_deconv(jax.random.fold_in(kc, 1), B=2, H=8, W=16, Ci=16, Co=4, G=8)
    _check_deconv(jax.random.fold_in(kc, 2), B=1, H=32, W=64, Ci=16, Co=8, G=4)

    params = init_params(kp)
    x = jax.random.normal(kx, (2, 1000), jnp.float32)    # batch=2, input_dims=1000

    fwd = jax.jit(inv_resnet_forward)
    out = jax.block_until_ready(fwd(params, x))

    assert out.shape == (2, 3, 256, 256), out.shape
    assert bool(jnp.all(jnp.isfinite(out)))
    assert bool(jnp.all((out >= 0.0) & (out <= 1.0)))    # sigmoid range
    print("KERNEL_OK")
</pallas_src>

<mosaic_0001>
module attributes {stable_mosaic.version = 11 : i64} {
  func.func @_deconv_kernel(%arg0: i32, %arg1: i32, %arg2: memref<1x10x10x32xbf16, #tpu.memory_space<vmem>>, %arg3: memref<3x96x64xbf16, #tpu.memory_space<vmem>>, %arg4: memref<1x64xf32, #tpu.memory_space<vmem>>, %arg5: memref<1x64x64xf32, #tpu.memory_space<vmem>>) attributes {dimension_semantics = [#tpu.dimension_semantics<parallel>, #tpu.dimension_semantics<parallel>], iteration_bounds = array<i64: 1, 1>, scalar_prefetch = 0 : i64, scratch_operands = 0 : i64, tpu.core_type = #tpu.core_type<tc>, window_params = [{transform_indices = @transform_0, window_bounds = array<i64: 1, 10, 10, 32>}, {pipeline_mode = #tpu.pipeline_mode<synchronous>, transform_indices = @transform_1, window_bounds = array<i64: 3, 96, 64>}, {pipeline_mode = #tpu.pipeline_mode<synchronous>, transform_indices = @transform_2, window_bounds = array<i64: 1, 64>}, {transform_indices = @transform_3, window_bounds = array<i64: 1, 64, 64>}]} {
    %c8_i32 = arith.constant 8 : i32
    %0 = arith.muli %arg1, %c8_i32 : i32
    %1 = tpu.assume_multiple %0, 8 : i32
    %cst = arith.constant 0.000000e+00 : f32
    %2 = vector.broadcast %cst : f32 to vector<64x64xf32>
    %c0_i32 = arith.constant 0 : i32
    %3 = arith.addi %1, %c0_i32 : i32
    %c0 = arith.constant 0 : index
    %4 = arith.index_cast %3 : i32 to index
    %c0_0 = arith.constant 0 : index
    %c0_1 = arith.constant 0 : index
    %5 = vector.load %arg2[%c0, %4, %c0_0, %c0_1] : memref<1x10x10x32xbf16, #tpu.memory_space<vmem>>, vector<1x8x8x32xbf16>
    %6 = vector.shape_cast %5 : vector<1x8x8x32xbf16> to vector<8x8x32xbf16>
    %c0_2 = arith.constant 0 : index
    %7 = arith.index_cast %3 : i32 to index
    %c1 = arith.constant 1 : index
    %c0_3 = arith.constant 0 : index
    %8 = vector.load %arg2[%c0_2, %7, %c1, %c0_3] : memref<1x10x10x32xbf16, #tpu.memory_space<vmem>>, vector<1x8x8x32xbf16>
    %9 = vector.shape_cast %8 : vector<1x8x8x32xbf16> to vector<8x8x32xbf16>
    %c0_4 = arith.constant 0 : index
    %10 = arith.index_cast %3 : i32 to index
    %c2 = arith.constant 2 : index
    %c0_5 = arith.constant 0 : index
    %11 = vector.load %arg2[%c0_4, %10, %c2, %c0_5] : memref<1x10x10x32xbf16, #tpu.memory_space<vmem>>, vector<1x8x8x32xbf16>
    %12 = vector.shape_cast %11 : vector<1x8x8x32xbf16> to vector<8x8x32xbf16>
    %13 = vector.shape_cast %6 : vector<8x8x32xbf16> to vector<64x32xbf16>
    %c0_6 = arith.constant 0 : index
    %c0_7 = arith.constant 0 : index
    %c0_8 = arith.constant 0 : index
    %14 = vector.load %arg3[%c0_6, %c0_7, %c0_8] : memref<3x96x64xbf16, #tpu.memory_space<vmem>>, vector<1x32x64xbf16>
    %15 = vector.shape_cast %14 : vector<1x32x64xbf16> to vector<32x64xbf16>
    %cst_9 = arith.constant dense<0.000000e+00> : vector<64x64xf32>
    %16 = tpu.matmul %13, %15, %cst_9 {dimension_numbers = #tpu.dot_dimension_numbers<[1], [0], [0], [1], [0, 0, 1, 1], [], []>} : vector<64x32xbf16>, vector<32x64xbf16>, vector<64x64xf32> -> vector<64x64xf32>
    %17 = arith.addf %2, %16 : vector<64x64xf32>
    %18 = vector.shape_cast %9 : vector<8x8x32xbf16> to vector<64x32xbf16>
    %c0_10 = arith.constant 0 : index
    %c32 = arith.constant 32 : index
    %c0_11 = arith.constant 0 : index
    %19 = vector.load %arg3[%c0_10, %c32, %c0_11] : memref<3x96x64xbf16, #tpu.memory_space<vmem>>, vector<1x32x64xbf16>
    %20 = vector.shape_cast %19 : vector<1x32x64xbf16> to vector<32x64xbf16>
    %cst_12 = arith.constant dense<0.000000e+00> : vector<64x64xf32>
    %21 = tpu.matmul %18, %20, %cst_12 {dimension_numbers = #tpu.dot_dimension_numbers<[1], [0], [0], [1], [0, 0, 1, 1], [], []>} : vector<64x32xbf16>, vector<32x64xbf16>, vector<64x64xf32> -> vector<64x64xf32>
    %22 = arith.addf %17, %21 : vector<64x64xf32>
    %23 = vector.shape_cast %12 : vector<8x8x32xbf16> to vector<64x32xbf16>
    %c0_13 = arith.constant 0 : index
    %c64 = arith.constant 64 : index
    %c0_14 = arith.constant 0 : index
    %24 = vector.load %arg3[%c0_13, %c64, %c0_14] : memref<3x96x64xbf16, #tpu.memory_space<vmem>>, vector<1x32x64xbf16>
    %25 = vector.shape_cast %24 : vector<1x32x64xbf16> to vector<32x64xbf16>
    %cst_15 = arith.constant dense<0.000000e+00> : vector<64x64xf32>
    %26 = tpu.matmul %23, %25, %cst_15 {dimension_numbers = #tpu.dot_dimension_numbers<[1], [0], [0], [1], [0, 0, 1, 1], [], []>} : vector<64x32xbf16>, vector<32x64xbf16>, vector<64x64xf32> -> vector<64x64xf32>
    %27 = arith.addf %22, %26 : vector<64x64xf32>
    %c1_i32 = arith.constant 1 : i32
    %28 = arith.addi %1, %c1_i32 : i32
    %c0_16 = arith.constant 0 : index
    %29 = arith.index_cast %28 : i32 to index
    %c0_17 = arith.constant 0 : index
    %c0_18 = arith.constant 0 : index
    %30 = vector.load %arg2[%c0_16, %29, %c0_17, %c0_18] : memref<1x10x10x32xbf16, #tpu.memory_space<vmem>>, vector<1x8x8x32xbf16>
    %31 = vector.shape_cast %30 : vector<1x8x8x32xbf16> to vector<8x8x32xbf16>
    %c0_19 = arith.constant 0 : index
    %32 = arith.index_cast %28 : i32 to index
    %c1_20 = arith.constant 1 : index
    %c0_21 = arith.constant 0 : index
    %33 = vector.load %arg2[%c0_19, %32, %c1_20, %c0_21] : memref<1x10x10x32xbf16, #tpu.memory_space<vmem>>, vector<1x8x8x32xbf16>
    %34 = vector.shape_cast %33 : vector<1x8x8x32xbf16> to vector<8x8x32xbf16>
    %c0_22 = arith.constant 0 : index
    %35 = arith.index_cast %28 : i32 to index
    %c2_23 = arith.constant 2 : index
    %c0_24 = arith.constant 0 : index
    %36 = vector.load %arg2[%c0_22, %35, %c2_23, %c0_24] : memref<1x10x10x32xbf16, #tpu.memory_space<vmem>>, vector<1x8x8x32xbf16>
    %37 = vector.shape_cast %36 : vector<1x8x8x32xbf16> to vector<8x8x32xbf16>
    %38 = vector.shape_cast %31 : vector<8x8x32xbf16> to vector<64x32xbf16>
    %c1_25 = arith.constant 1 : index
    %c0_26 = arith.constant 0 : index
    %c0_27 = arith.constant 0 : index
    %39 = vector.load %arg3[%c1_25, %c0_26, %c0_27] : memref<3x96x64xbf16, #tpu.memory_space<vmem>>, vector<1x32x64xbf16>
    %40 = vector.shape_cast %39 : vector<1x32x64xbf16> to vector<32x64xbf16>
    %cst_28 = arith.constant dense<0.000000e+00> : vector<64x64xf32>
    %41 = tpu.matmul %38, %40, %cst_28 {dimension_numbers = #tpu.dot_dimension_numbers<[1], [0], [0], [1], [0, 0, 1, 1], [], []>} : vector<64x32xbf16>, vector<32x64xbf16>, vector<64x64xf32> -> vector<64x64xf32>
    %42 = arith.addf %27, %41 : vector<64x64xf32>
    %43 = vector.shape_cast %34 : vector<8x8x32xbf16> to vector<64x32xbf16>
    %c1_29 = arith.constant 1 : index
    %c32_30 = arith.constant 32 : index
    %c0_31 = arith.constant 0 : index
    %44 = vector.load %arg3[%c1_29, %c32_30, %c0_31] : memref<3x96x64xbf16, #tpu.memory_space<vmem>>, vector<1x32x64xbf16>
    %45 = vector.shape_cast %44 : vector<1x32x64xbf16> to vector<32x64xbf16>
    %cst_32 = arith.constant dense<0.000000e+00> : vector<64x64xf32>
    %46 = tpu.matmul %43, %45, %cst_32 {dimension_numbers = #tpu.dot_dimension_numbers<[1], [0], [0], [1], [0, 0, 1, 1], [], []>} : vector<64x32xbf16>, vector<32x64xbf16>, vector<64x64xf32> -> vector<64x64xf32>
    %47 = arith.addf %42, %46 : vector<64x64xf32>
    %48 = vector.shape_cast %37 : vector<8x8x32xbf16> to vector<64x32xbf16>
    %c1_33 = arith.constant 1 : index
    %c64_34 = arith.constant 64 : index
    %c0_35 = arith.constant 0 : index
    %49 = vector.load %arg3[%c1_33, %c64_34, %c0_35] : memref<3x96x64xbf16, #tpu.memory_space<vmem>>, vector<1x32x64xbf16>
    %50 = vector.shape_cast %49 : vector<1x32x64xbf16> to vector<32x64xbf16>
    %cst_36 = arith.constant dense<0.000000e+00> : vector<64x64xf32>
    %51 = tpu.matmul %48, %50, %cst_36 {dimension_numbers = #tpu.dot_dimension_numbers<[1], [0], [0], [1], [0, 0, 1, 1], [], []>} : vector<64x32xbf16>, vector<32x64xbf16>, vector<64x64xf32> -> vector<64x64xf32>
    %52 = arith.addf %47, %51 : vector<64x64xf32>
    %c2_i32 = arith.constant 2 : i32
    %53 = arith.addi %1, %c2_i32 : i32
    %c0_37 = arith.constant 0 : index
    %54 = arith.index_cast %53 : i32 to index
    %c0_38 = arith.constant 0 : index
    %c0_39 = arith.constant 0 : index
    %55 = vector.load %arg2[%c0_37, %54, %c0_38, %c0_39] : memref<1x10x10x32xbf16, #tpu.memory_space<vmem>>, vector<1x8x8x32xbf16>
    %56 = vector.shape_cast %55 : vector<1x8x8x32xbf16> to vector<8x8x32xbf16>
    %c0_40 = arith.constant 0 : index
    %57 = arith.index_cast %53 : i32 to index
    %c1_41 = arith.constant 1 : index
    %c0_42 = arith.constant 0 : index
    %58 = vector.load %arg2[%c0_40, %57, %c1_41, %c0_42] : memref<1x10x10x32xbf16, #tpu.memory_space<vmem>>, vector<1x8x8x32xbf16>
    %59 = vector.shape_cast %58 : vector<1x8x8x32xbf16> to vector<8x8x32xbf16>
    %c0_43 = arith.constant 0 : index
    %60 = arith.index_cast %53 : i32 to index
    %c2_44 = arith.constant 2 : index
    %c0_45 = arith.constant 0 : index
    %61 = vector.load %arg2[%c0_43, %60, %c2_44, %c0_45] : memref<1x10x10x32xbf16, #tpu.memory_space<vmem>>, vector<1x8x8x32xbf16>
    %62 = vector.shape_cast %61 : vector<1x8x8x32xbf16> to vector<8x8x32xbf16>
    %63 = vector.shape_cast %56 : vector<8x8x32xbf16> to vector<64x32xbf16>
    %c2_46 = arith.constant 2 : index
    %c0_47 = arith.constant 0 : index
    %c0_48 = arith.constant 0 : index
    %64 = vector.load %arg3[%c2_46, %c0_47, %c0_48] : memref<3x96x64xbf16, #tpu.memory_space<vmem>>, vector<1x32x64xbf16>
    %65 = vector.shape_cast %64 : vector<1x32x64xbf16> to vector<32x64xbf16>
    %cst_49 = arith.constant dense<0.000000e+00> : vector<64x64xf32>
    %66 = tpu.matmul %63, %65, %cst_49 {dimension_numbers = #tpu.dot_dimension_numbers<[1], [0], [0], [1], [0, 0, 1, 1], [], []>} : vector<64x32xbf16>, vector<32x64xbf16>, vector<64x64xf32> -> vector<64x64xf32>
    %67 = arith.addf %52, %66 : vector<64x64xf32>
    %68 = vector.shape_cast %59 : vector<8x8x32xbf16> to vector<64x32xbf16>
    %c2_50 = arith.constant 2 : index
    %c32_51 = arith.constant 32 : index
    %c0_52 = arith.constant 0 : index
    %69 = vector.load %arg3[%c2_50, %c32_51, %c0_52] : memref<3x96x64xbf16, #tpu.memory_space<vmem>>, vector<1x32x64xbf16>
    %70 = vector.shape_cast %69 : vector<1x32x64xbf16> to vector<32x64xbf16>
    %cst_53 = arith.constant dense<0.000000e+00> : vector<64x64xf32>
    %71 = tpu.matmul %68, %70, %cst_53 {dimension_numbers = #tpu.dot_dimension_numbers<[1], [0], [0], [1], [0, 0, 1, 1], [], []>} : vector<64x32xbf16>, vector<32x64xbf16>, vector<64x64xf32> -> vector<64x64xf32>
    %72 = arith.addf %67, %71 : vector<64x64xf32>
    %73 = vector.shape_cast %62 : vector<8x8x32xbf16> to vector<64x32xbf16>
    %c2_54 = arith.constant 2 : index
    %c64_55 = arith.constant 64 : index
    %c0_56 = arith.constant 0 : index
    %74 = vector.load %arg3[%c2_54, %c64_55, %c0_56] : memref<3x96x64xbf16, #tpu.memory_space<vmem>>, vector<1x32x64xbf16>
    %75 = vector.shape_cast %74 : vector<1x32x64xbf16> to vector<32x64xbf16>
    %cst_57 = arith.constant dense<0.000000e+00> : vector<64x64xf32>
    %76 = tpu.matmul %73, %75, %cst_57 {dimension_numbers = #tpu.dot_dimension_numbers<[1], [0], [0], [1], [0, 0, 1, 1], [], []>} : vector<64x32xbf16>, vector<32x64xbf16>, vector<64x64xf32> -> vector<64x64xf32>
    %77 = arith.addf %72, %76 : vector<64x64xf32>
    %c0_58 = arith.constant 0 : index
    %c0_59 = arith.constant 0 : index
    %78 = vector.load %arg4[%c0_58, %c0_59] : memref<1x64xf32, #tpu.memory_space<vmem>>, vector<1x64xf32>
    %79 = vector.broadcast %78 : vector<1x64xf32> to vector<64x64xf32>
    %80 = arith.addf %77, %79 : vector<64x64xf32>
    %c0_60 = arith.constant 0 : index
    %c0_61 = arith.constant 0 : index
    %c0_62 = arith.constant 0 : index
    %81 = vector.load %arg5[%c0_60, %c0_61, %c0_62] : memref<1x64x64xf32, #tpu.memory_space<vmem>>, vector<1x64x64xf32>
    %82 = vector.shape_cast %81 : vector<1x64x64xf32> to vector<64x64xf32>
    %83 = vector.shape_cast %80 : vector<64x64xf32> to vector<1x64x64xf32>
    tpu.vector_store %arg5[%c0_60, %c0_61, %c0_62], %83 {strides = array<i32>} : memref<1x64x64xf32, #tpu.memory_space<vmem>>, vector<1x64x64xf32>,
    return
  }
  func.func @transform_0(%arg0: i32, %arg1: i32) -> (i32, i32, i32, i32) {
    %c0_i32 = arith.constant 0 : i32
    %c0_i32_0 = arith.constant 0 : i32
    %c0_i32_1 = arith.constant 0 : i32
    %c0_i32_2 = arith.constant 0 : i32
    return %arg0, %c0_i32, %c0_i32_0, %c0_i32_1 : i32, i32, i32, i32
  }
  func.func @transform_1(%arg0: i32, %arg1: i32) -> (i32, i32, i32) {
    %c0_i32 = arith.constant 0 : i32
    %c0_i32_0 = arith.constant 0 : i32
    %c0_i32_1 = arith.constant 0 : i32
    %c0_i32_2 = arith.constant 0 : i32
    return %c0_i32, %c0_i32_0, %c0_i32_1 : i32, i32, i32
  }
  func.func @transform_2(%arg0: i32, %arg1: i32) -> (i32, i32) {
    %c0_i32 = arith.constant 0 : i32
    %c0_i32_0 = arith.constant 0 : i32
    %c0_i32_1 = arith.constant 0 : i32
    return %c0_i32, %c0_i32_0 : i32, i32
  }
  func.func @transform_3(%arg0: i32, %arg1: i32) -> (i32, i32, i32) {
    %c0_i32 = arith.constant 0 : i32
    %c0_i32_0 = arith.constant 0 : i32
    return %arg0, %arg1, %c0_i32 : i32, i32, i32
  }
}

</mosaic_0001>

<llo_original>
// kernel: tpu_custom_call.1
$region0: #{tpu_custom_call.1}
  #allocation0 [shape = 'u32[]', space=smem, size = 0x4, offset = 0x4, fixed_abs, tag = 'smem constant byte address 0x4 - core index']
  #allocation1 [shape = 'u32[72,128]{1,0:T(1,128)}', space=vmem, size = 0x9000, scoped, tag = 'internal scratch']
  %s0 = inlined_call_operand.vmem [shape: bf16[1,10,10,32], index: 0, kind: input, shape index: {}]
  %s1 = inlined_call_operand.vmem [shape: bf16[3,96,64], index: 1, kind: input, shape index: {}]
  %s2 = inlined_call_operand.vmem [shape: f32[1,64], index: 2, kind: input, shape index: {}]
  %s3 = inlined_call_operand.hbm [shape: f32[1,64,64], index: 3, kind: output, shape index: {}]
  %s4 = sld [smem:[#allocation0]]
  $region22: #{tpu_custom_call.1} parent=0
    _
  %s6 = ssub.s32 1, %s4
  %s7 = scalar_select 0, %s6, %s4
  $region1: #{tpu_custom_call.1} parent=0
    #allocation2 [shape = 'u8[32768]{0}', space=vmem, size = 0x8000, scoped, tag = 'output window, operand 0, single buffered']
    #allocation3 [shape = 's32[1]{0}', space=sflag, size = 0x4, scoped, tag = 'scoped memory for tpu_custom_call.1']
    %8 = vsyncpa [#allocation3], 0
    // Predicated region
    $region2: #{tpu_custom_call.1} parent=1 // pred_check
      _
    $region3: #{tpu_custom_call.1} parent=1 // pred_check_branch
      %10 = sbr.rel (0) target = $region5
    $region4: #{tpu_custom_call.1} parent=1 // pred_region
      _
    $region5: #{tpu_custom_call.1} parent=1 // pred_fallthru
      _
    // Predicated region
    $region6: #{tpu_custom_call.1} parent=1 // pred_check
      _
    $region7: #{tpu_custom_call.1} parent=1 // pred_check_branch
      %12 = sbr.rel (0) target = $region9
    $region8: #{tpu_custom_call.1} parent=1 // pred_region
      _
    $region9: #{tpu_custom_call.1} parent=1 // pred_fallthru
      _
    // Predicated region
    $region10: #{tpu_custom_call.1} parent=1 // pred_check
      _
    $region11: #{tpu_custom_call.1} parent=1 // pred_check_branch
      %14 = sbr.rel (0) target = $region13
    $region12: #{tpu_custom_call.1} parent=1 // pred_region
      _
    $region13: #{tpu_custom_call.1} parent=1 // pred_fallthru
      _
    %s16 = smul.u32 0, 8
    %s17 = smul.u32 %s16, 2
    %s18 = smul.addr %s17, 4
    %s19 = scalar_lea.vmem %s0, %s18
    %v20 = vld [vmem:[%s19] sm:$0xf]
    %v21 = vld [vmem:[%s19 + $0x8] sm:$0xf]
    %v22 = vld [vmem:[%s19 + $0x10] sm:$0xf]
    %v23 = vld [vmem:[%s19 + $0x18] sm:$0xf]
    %v24 = vld [vmem:[%s19 + $0x20] sm:$0xf]
    %v25 = vld [vmem:[%s19 + $0x28] sm:$0xf]
    %v26 = vld [vmem:[%s19 + $0x30] sm:$0xf]
    %v27 = vld [vmem:[%s19 + $0x38] sm:$0xf]
    %v28 = vld [vmem:[%s19 + $0x4] sm:$0x1]
    %v29 = vld [vmem:[%s19 + $0xc] sm:$0x1]
    %v30 = vld [vmem:[%s19 + $0x14] sm:$0x1]
    %v31 = vld [vmem:[%s19 + $0x1c] sm:$0x1]
    %v32 = vld [vmem:[%s19 + $0x24] sm:$0x1]
    %v33 = vld [vmem:[%s19 + $0x2c] sm:$0x1]
    %v34 = vld [vmem:[%s19 + $0x34] sm:$0x1]
    %v35 = vld [vmem:[%s19 + $0x3c] sm:$0x1]
    %v36 = vld [vmem:[%s19] sm:$0xe]
    %v37 = vld [vmem:[%s19 + $0x8] sm:$0xe]
    %v38 = vld [vmem:[%s19 + $0x10] sm:$0xe]
    %v39 = vld [vmem:[%s19 + $0x18] sm:$0xe]
    %v40 = vld [vmem:[%s19 + $0x20] sm:$0xe]
    %v41 = vld [vmem:[%s19 + $0x28] sm:$0xe]
    %v42 = vld [vmem:[%s19 + $0x30] sm:$0xe]
    %v43 = vld [vmem:[%s19 + $0x38] sm:$0xe]
    %v44 = vld [vmem:[%s1] sm:$0xf]
    %v45 = vld [vmem:[%s1 + $0x4] sm:$0xf]
    %v46 = vld [vmem:[%s1 + $0x8] sm:$0xf]
    %v47 = vld [vmem:[%s1 + $0xc] sm:$0xf]
    %vm48 = vsmask.f32 3328
    %vm49 = vsmask.f32 7440
    %vm50 = vmor %vm48, %vm49
    %v52 = vshrl.u32 %v20, 16
    %v54 = vrot.slane %v52, 4
    %v55 = vshll.u32 %v20, 16
    %v57 = vrot.slane %v55, 5
    %v58 = vor.u32 %v54, %v57
    %v59 = vrot.slane %v58, 4
    %v61 = vshll.u32 %v28, 16
    %v63 = vrot.slane %v61, 5
    %v64 = vsel %vm50, %v59, %v63
    %v66 = vshrl.u32 %v21, 16
    %v68 = vrot.slane %v66, 4
    %v69 = vshll.u32 %v21, 16
    %v71 = vrot.slane %v69, 5
    %v72 = vor.u32 %v68, %v71
    %v73 = vrot.slane %v72, 4
    %v75 = vshll.u32 %v29, 16
    %v77 = vrot.slane %v75, 5
    %v78 = vsel %vm50, %v73, %v77
    %v80 = vshrl.u32 %v22, 16
    %v82 = vrot.slane %v80, 4
    %v83 = vshll.u32 %v22, 16
    %v85 = vrot.slane %v83, 5
    %v86 = vor.u32 %v82, %v85
    %v87 = vrot.slane %v86, 4
    %v89 = vshll.u32 %v30, 16
    %v91 = vrot.slane %v89, 5
    %v92 = vsel %vm50, %v87, %v91
    %v94 = vshrl.u32 %v23, 16
    %v96 = vrot.slane %v94, 4
    %v97 = vshll.u32 %v23, 16
    %v99 = vrot.slane %v97, 5
    %v100 = vor.u32 %v96, %v99
    %v101 = vrot.slane %v100, 4
    %v103 = vshll.u32 %v31, 16
    %v105 = vrot.slane %v103, 5
    %v106 = vsel %vm50, %v101, %v105
    %v108 = vshrl.u32 %v24, 16
    %v110 = vrot.slane %v108, 4
    %v111 = vshll.u32 %v24, 16
    %v113 = vrot.slane %v111, 5
    %v114 = vor.u32 %v110, %v113
    %v115 = vrot.slane %v114, 4
    %v117 = vshll.u32 %v32, 16
    %v119 = vrot.slane %v117, 5
    %v120 = vsel %vm50, %v115, %v119
    %v122 = vshrl.u32 %v25, 16
    %v124 = vrot.slane %v122, 4
    %v125 = vshll.u32 %v25, 16
    %v127 = vrot.slane %v125, 5
    %v128 = vor.u32 %v124, %v127
    %v129 = vrot.slane %v128, 4
    %v131 = vshll.u32 %v33, 16
    %v133 = vrot.slane %v131, 5
    %v134 = vsel %vm50, %v129, %v133
    %v136 = vshrl.u32 %v26, 16
    %v138 = vrot.slane %v136, 4
    %v139 = vshll.u32 %v26, 16
    %v141 = vrot.slane %v139, 5
    %v142 = vor.u32 %v138, %v141
    %v143 = vrot.slane %v142, 4
    %v145 = vshll.u32 %v34, 16
    %v147 = vrot.slane %v145, 5
    %v148 = vsel %vm50, %v143, %v147
    %v150 = vshrl.u32 %v27, 16
    %v152 = vrot.slane %v150, 4
    %v153 = vshll.u32 %v27, 16
    %v155 = vrot.slane %v153, 5
    %v156 = vor.u32 %v152, %v155
    %v157 = vrot.slane %v156, 4
    %v159 = vshll.u32 %v35, 16
    %v161 = vrot.slane %v159, 5
    %v162 = vsel %vm50, %v157, %v161
    %v163 = vld [vmem:[%s1 + $0x10] sm:$0xf]
    %v164 = vld [vmem:[%s1 + $0x14] sm:$0xf]
    %v165 = vld [vmem:[%s1 + $0x18] sm:$0xf]
    %v166 = vld [vmem:[%s1 + $0x1c] sm:$0xf]
    %v167 = vunpack.c.l.b16 %v64
    %v168 = vunpack.c.l.b16 %v78
    %v169 = vunpack.c.l.b16 %v92
    %v170 = vunpack.c.l.b16 %v106
    %v171 = vunpack.c.l.b16 %v120
    %v172 = vunpack.c.l.b16 %v134
    %v173 = vunpack.c.l.b16 %v148
    %v174 = vunpack.c.l.b16 %v162
    %v175 = vpack.c.b16 %v168, %v167
    %v176 = vpack.c.b16 %v170, %v169
    %v177 = vpack.c.b16 %v172, %v171
    %v178 = vpack.c.b16 %v174, %v173
    %v183 = vunpack.c.l.b16 %v163
    %v184 = vunpack.c.l.b16 %v164
    %v185 = vunpack.c.l.b16 %v165
    %v186 = vunpack.c.l.b16 %v166
    %v187 = vpack.c.b16 %v184, %v183
    %v188 = vpack.c.b16 %v186, %v185
    %vm191 = vcmask 261120
    %v193 = vsel %vm191, %v175, 0
    %v196 = vsel %vm191, %v176, 0
    %v199 = vsel %vm191, %v177, 0
    %v202 = vsel %vm191, %v178, 0
    %204 = vmatpush.bf16.msra.mxu0 0
    %205 = vmatpush.bf16.msra.mxu0 0
    %206 = vmatpush.bf16.msra.mxu0 0
    %207 = vmatpush.bf16.msra.mxu0 0
    %208 = vmatpush.bf16.msra.mxu0 0
    %209 = vmatpush.bf16.msra.mxu0 0
    %210 = vmatpush.bf16.msra.mxu0 %v188
    %211 = vmatpush.bf16.msra.mxu0 %v187
    %212 = vmatmul.bf16.gmra.mxu0 %v193
    %v213 = vpop.f32.mrf.mxu0
    %v214 = vadd.f32 0.0, %v213
    %v215 = vpop.f32.mrf.mxu0
    %v216 = vadd.f32 0.0, %v215
    %217 = vmatmul.bf16.gmra.mxu0 %v196
    %v218 = vpop.f32.mrf.mxu0
    %v219 = vadd.f32 0.0, %v218
    %v220 = vpop.f32.mrf.mxu0
    %v221 = vadd.f32 0.0, %v220
    %222 = vmatmul.bf16.gmra.mxu0 %v199
    %v223 = vpop.f32.mrf.mxu0
    %v224 = vadd.f32 0.0, %v223
    %v225 = vpop.f32.mrf.mxu0
    %v226 = vadd.f32 0.0, %v225
    %227 = vmatmul.bf16.gmra.mxu0 %v202
    %v228 = vpop.f32.mrf.mxu0
    %v229 = vadd.f32 0.0, %v228
    %v230 = vpop.f32.mrf.mxu0
    %v231 = vadd.f32 0.0, %v230
    %232 = vdwg.mxu0
    %v241 = vunpack.c.l.b16 %v20
    %v242 = vunpack.c.l.b16 %v21
    %v243 = vunpack.c.l.b16 %v22
    %v244 = vunpack.c.l.b16 %v23
    %v245 = vunpack.c.l.b16 %v24
    %v246 = vunpack.c.l.b16 %v25
    %v247 = vunpack.c.l.b16 %v26
    %v248 = vunpack.c.l.b16 %v27
    %v249 = vpack.c.b16 %v242, %v241
    %v250 = vpack.c.b16 %v244, %v243
    %v251 = vpack.c.b16 %v246, %v245
    %v252 = vpack.c.b16 %v248, %v247
    %v257 = vunpack.c.l.b16 %v44
    %v258 = vunpack.c.l.b16 %v45
    %v259 = vunpack.c.l.b16 %v46
    %v260 = vunpack.c.l.b16 %v47
    %v261 = vpack.c.b16 %v258, %v257
    %v262 = vpack.c.b16 %v260, %v259
    %v266 = vsel %vm191, %v249, 0
    %v269 = vsel %vm191, %v250, 0
    %v272 = vsel %vm191, %v251, 0
    %v275 = vsel %vm191, %v252, 0
    %277 = vmatpush.bf16.msra.mxu0 0
    %278 = vmatpush.bf16.msra.mxu0 0
    %279 = vmatpush.bf16.msra.mxu0 0
    %280 = vmatpush.bf16.msra.mxu0 0
    %281 = vmatpush.bf16.msra.mxu0 0
    %282 = vmatpush.bf16.msra.mxu0 0
    %283 = vmatpush.bf16.msra.mxu0 %v262
    %284 = vmatpush.bf16.msra.mxu0 %v261
    %285 = vmatmul.bf16.gmra.mxu0 %v266
    %v286 = vpop.f32.mrf.mxu0
    %v287 = vadd.f32 %v214, %v286
    %v288 = vpop.f32.mrf.mxu0
    %v289 = vadd.f32 %v216, %v288
    %290 = vmatmul.bf16.gmra.mxu0 %v269
    %v291 = vpop.f32.mrf.mxu0
    %v292 = vadd.f32 %v219, %v291
    %v293 = vpop.f32.mrf.mxu0
    %v294 = vadd.f32 %v221, %v293
    %295 = vmatmul.bf16.gmra.mxu0 %v272
    %v296 = vpop.f32.mrf.mxu0
    %v297 = vadd.f32 %v224, %v296
    %v298 = vpop.f32.mrf.mxu0
    %v299 = vadd.f32 %v226, %v298
    %300 = vmatmul.bf16.gmra.mxu0 %v275
    %v301 = vpop.f32.mrf.mxu0
    %v302 = vadd.f32 %v229, %v301
    %v303 = vpop.f32.mrf.mxu0
    %v304 = vadd.f32 %v231, %v303
    %305 = vdwg.mxu0
    %vm322 = vcmask 1042432
    %vm323 = vcmask 1046532
    %vm324 = vmor %vm322, %vm323
    %v325 = vrot.slane %v36, 5
    %v326 = vrot.slane %v325, 4
    %v327 = vrot.slane %v28, 5
    %v328 = vsel %vm324, %v326, %v327
    %v329 = vrot.slane %v37, 5
    %v330 = vrot.slane %v329, 4
    %v331 = vrot.slane %v29, 5
    %v332 = vsel %vm324, %v330, %v331
    %v333 = vrot.slane %v38, 5
    %v334 = vrot.slane %v333, 4
    %v335 = vrot.slane %v30, 5
    %v336 = vsel %vm324, %v334, %v335
    %v337 = vrot.slane %v39, 5
    %v338 = vrot.slane %v337, 4
    %v339 = vrot.slane %v31, 5
    %v340 = vsel %vm324, %v338, %v339
    %v341 = vrot.slane %v40, 5
    %v342 = vrot.slane %v341, 4
    %v343 = vrot.slane %v32, 5
    %v344 = vsel %vm324, %v342, %v343
    %v345 = vrot.slane %v41, 5
    %v346 = vrot.slane %v345, 4
    %v347 = vrot.slane %v33, 5
    %v348 = vsel %vm324, %v346, %v347
    %v349 = vrot.slane %v42, 5
    %v350 = vrot.slane %v349, 4
    %v351 = vrot.slane %v34, 5
    %v352 = vsel %vm324, %v350, %v351
    %v353 = vrot.slane %v43, 5
    %v354 = vrot.slane %v353, 4
    %v355 = vrot.slane %v35, 5
    %v356 = vsel %vm324, %v354, %v355
    %v357 = vld [vmem:[%s1 + $0x20] sm:$0xf]
    %v358 = vld [vmem:[%s1 + $0x24] sm:$0xf]
    %v359 = vld [vmem:[%s1 + $0x28] sm:$0xf]
    %v360 = vld [vmem:[%s1 + $0x2c] sm:$0xf]
    %v361 = vunpack.c.l.b16 %v328
    %v362 = vunpack.c.l.b16 %v332
    %v363 = vunpack.c.l.b16 %v336
    %v364 = vunpack.c.l.b16 %v340
    %v365 = vunpack.c.l.b16 %v344
    %v366 = vunpack.c.l.b16 %v348
    %v367 = vunpack.c.l.b16 %v352
    %v368 = vunpack.c.l.b16 %v356
    %v369 = vpack.c.b16 %v362, %v361
    %v370 = vpack.c.b16 %v364, %v363
    %v371 = vpack.c.b16 %v366, %v365
    %v372 = vpack.c.b16 %v368, %v367
    %v377 = vunpack.c.l.b16 %v357
    %v378 = vunpack.c.l.b16 %v358
    %v379 = vunpack.c.l.b16 %v359
    %v380 = vunpack.c.l.b16 %v360
    %v381 = vpack.c.b16 %v378, %v377
    %v382 = vpack.c.b16 %v380, %v379
    %v386 = vsel %vm191, %v369, 0
    %v389 = vsel %vm191, %v370, 0
    %v392 = vsel %vm191, %v371, 0
    %v395 = vsel %vm191, %v372, 0
    %397 = vmatpush.bf16.msra.mxu0 0
    %398 = vmatpush.bf16.msra.mxu0 0
    %399 = vmatpush.bf16.msra.mxu0 0
    %400 = vmatpush.bf16.msra.mxu0 0
    %401 = vmatpush.bf16.msra.mxu0 0
    %402 = vmatpush.bf16.msra.mxu0 0
    %403 = vmatpush.bf16.msra.mxu0 %v382
    %404 = vmatpush.bf16.msra.mxu0 %v381
    %405 = vmatmul.bf16.gmra.mxu0 %v386
    %v406 = vpop.f32.mrf.mxu0
    %v407 = vadd.f32 0.0, %v406
    %v408 = vpop.f32.mrf.mxu0
    %v409 = vadd.f32 0.0, %v408
    %410 = vmatmul.bf16.gmra.mxu0 %v389
    %v411 = vpop.f32.mrf.mxu0
    %v412 = vadd.f32 0.0, %v411
    %v413 = vpop.f32.mrf.mxu0
    %v414 = vadd.f32 0.0, %v413
    %415 = vmatmul.bf16.gmra.mxu0 %v392
    %v416 = vpop.f32.mrf.mxu0
    %v417 = vadd.f32 0.0, %v416
    %v418 = vpop.f32.mrf.mxu0
    %v419 = vadd.f32 0.0, %v418
    %420 = vmatmul.bf16.gmra.mxu0 %v395
    %v421 = vpop.f32.mrf.mxu0
    %v422 = vadd.f32 0.0, %v421
    %v423 = vpop.f32.mrf.mxu0
    %v424 = vadd.f32 0.0, %v423
    %425 = vdwg.mxu0
    %v426 = vadd.f32 %v287, %v407
    %v427 = vadd.f32 %v289, %v409
    %v428 = vadd.f32 %v292, %v412
    %v429 = vadd.f32 %v294, %v414
    %v430 = vadd.f32 %v297, %v417
    %v431 = vadd.f32 %v299, %v419
    %v432 = vadd.f32 %v302, %v422
    %v433 = vadd.f32 %v304, %v424
    %s434 = sadd.s32 %s16, 1
    %s435 = smul.u32 %s434, 2
    %s436 = smul.addr %s435, 4
    %s437 = scalar_lea.vmem %s0, %s436
    %v438 = vld [vmem:[%s437] sm:$0xf]
    %v439 = vld [vmem:[%s437 + $0x8] sm:$0xf]
    %v440 = vld [vmem:[%s437 + $0x10] sm:$0xf]
    %v441 = vld [vmem:[%s437 + $0x18] sm:$0xf]
    %v442 = vld [vmem:[%s437 + $0x20] sm:$0xf]
    %v443 = vld [vmem:[%s437 + $0x28] sm:$0xf]
    %v444 = vld [vmem:[%s437 + $0x30] sm:$0xf]
    %v445 = vld [vmem:[%s437 + $0x38] sm:$0xf]
    %v446 = vld [vmem:[%s437 + $0x4] sm:$0x1]
    %v447 = vld [vmem:[%s437 + $0xc] sm:$0x1]
    %v448 = vld [vmem:[%s437 + $0x14] sm:$0x1]
    %v449 = vld [vmem:[%s437 + $0x1c] sm:$0x1]
    %v450 = vld [vmem:[%s437 + $0x24] sm:$0x1]
    %v451 = vld [vmem:[%s437 + $0x2c] sm:$0x1]
    %v452 = vld [vmem:[%s437 + $0x34] sm:$0x1]
    %v453 = vld [vmem:[%s437 + $0x3c] sm:$0x1]
    %v454 = vld [vmem:[%s437] sm:$0xe]
    %v455 = vld [vmem:[%s437 + $0x8] sm:$0xe]
    %v456 = vld [vmem:[%s437 + $0x10] sm:$0xe]
    %v457 = vld [vmem:[%s437 + $0x18] sm:$0xe]
    %v458 = vld [vmem:[%s437 + $0x20] sm:$0xe]
    %v459 = vld [vmem:[%s437 + $0x28] sm:$0xe]
    %v460 = vld [vmem:[%s437 + $0x30] sm:$0xe]
    %v461 = vld [vmem:[%s437 + $0x38] sm:$0xe]
    %s462 = scalar_lea.vmem %s1, 48
    %v463 = vld [vmem:[%s462] sm:$0xf]
    %v464 = vld [vmem:[%s462 + $0x4] sm:$0xf]
    %v465 = vld [vmem:[%s462 + $0x8] sm:$0xf]
    %v466 = vld [vmem:[%s462 + $0xc] sm:$0xf]
    %v475 = vunpack.c.l.b16 %v438
    %v476 = vunpack.c.l.b16 %v439
    %v477 = vunpack.c.l.b16 %v440
    %v478 = vunpack.c.l.b16 %v441
    %v479 = vunpack.c.l.b16 %v442
    %v480 = vunpack.c.l.b16 %v443
    %v481 = vunpack.c.l.b16 %v444
    %v482 = vunpack.c.l.b16 %v445
    %v483 = vpack.c.b16 %v476, %v475
    %v484 = vpack.c.b16 %v478, %v477
    %v485 = vpack.c.b16 %v480, %v479
    %v486 = vpack.c.b16 %v482, %v481
    %v491 = vunpack.c.l.b16 %v463
    %v492 = vunpack.c.l.b16 %v464
    %v493 = vunpack.c.l.b16 %v465
    %v494 = vunpack.c.l.b16 %v466
    %v495 = vpack.c.b16 %v492, %v491
    %v496 = vpack.c.b16 %v494, %v493
    %v500 = vsel %vm191, %v483, 0
    %v503 = vsel %vm191, %v484, 0
    %v506 = vsel %vm191, %v485, 0
    %v509 = vsel %vm191, %v486, 0
    %511 = vmatpush.bf16.msra.mxu0 0
    %512 = vmatpush.bf16.msra.mxu0 0
    %513 = vmatpush.bf16.msra.mxu0 0
    %514 = vmatpush.bf16.msra.mxu0 0
    %515 = vmatpush.bf16.msra.mxu0 0
    %516 = vmatpush.bf16.msra.mxu0 0
    %517 = vmatpush.bf16.msra.mxu0 %v496
    %518 = vmatpush.bf16.msra.mxu0 %v495
    %519 = vmatmul.bf16.gmra.mxu0 %v500
    %v520 = vpop.f32.mrf.mxu0
    %v521 = vadd.f32 0.0, %v520
    %v522 = vpop.f32.mrf.mxu0
    %v523 = vadd.f32 0.0, %v522
    %524 = vmatmul.bf16.gmra.mxu0 %v503
    %v525 = vpop.f32.mrf.mxu0
    %v526 = vadd.f32 0.0, %v525
    %v527 = vpop.f32.mrf.mxu0
    %v528 = vadd.f32 0.0, %v527
    %529 = vmatmul.bf16.gmra.mxu0 %v506
    %v530 = vpop.f32.mrf.mxu0
    %v531 = vadd.f32 0.0, %v530
    %v532 = vpop.f32.mrf.mxu0
    %v533 = vadd.f32 0.0, %v532
    %534 = vmatmul.bf16.gmra.mxu0 %v509
    %v535 = vpop.f32.mrf.mxu0
    %v536 = vadd.f32 0.0, %v535
    %v537 = vpop.f32.mrf.mxu0
    %v538 = vadd.f32 0.0, %v537
    %539 = vdwg.mxu0
    %v540 = vadd.f32 %v426, %v521
    %v541 = vadd.f32 %v427, %v523
    %v542 = vadd.f32 %v428, %v526
    %v543 = vadd.f32 %v429, %v528
    %v544 = vadd.f32 %v430, %v531
    %v545 = vadd.f32 %v431, %v533
    %v546 = vadd.f32 %v432, %v536
    %v547 = vadd.f32 %v433, %v538
    %v549 = vshrl.u32 %v438, 16
    %v551 = vrot.slane %v549, 4
    %v552 = vshll.u32 %v438, 16
    %v554 = vrot.slane %v552, 5
    %v555 = vor.u32 %v551, %v554
    %v556 = vrot.slane %v555, 4
    %v558 = vshll.u32 %v446, 16
    %v560 = vrot.slane %v558, 5
    %v561 = vsel %vm50, %v556, %v560
    %v563 = vshrl.u32 %v439, 16
    %v565 = vrot.slane %v563, 4
    %v566 = vshll.u32 %v439, 16
    %v568 = vrot.slane %v566, 5
    %v569 = vor.u32 %v565, %v568
    %v570 = vrot.slane %v569, 4
    %v572 = vshll.u32 %v447, 16
    %v574 = vrot.slane %v572, 5
    %v575 = vsel %vm50, %v570, %v574
    %v577 = vshrl.u32 %v440, 16
    %v579 = vrot.slane %v577, 4
    %v580 = vshll.u32 %v440, 16
    %v582 = vrot.slane %v580, 5
    %v583 = vor.u32 %v579, %v582
    %v584 = vrot.slane %v583, 4
    %v586 = vshll.u32 %v448, 16
    %v588 = vrot.slane %v586, 5
    %v589 = vsel %vm50, %v584, %v588
    %v591 = vshrl.u32 %v441, 16
    %v593 = vrot.slane %v591, 4
    %v594 = vshll.u32 %v441, 16
    %v596 = vrot.slane %v594, 5
    %v597 = vor.u32 %v593, %v596
    %v598 = vrot.slane %v597, 4
    %v600 = vshll.u32 %v449, 16
    %v602 = vrot.slane %v600, 5
    %v603 = vsel %vm50, %v598, %v602
    %v605 = vshrl.u32 %v442, 16
    %v607 = vrot.slane %v605, 4
    %v608 = vshll.u32 %v442, 16
    %v610 = vrot.slane %v608, 5
    %v611 = vor.u32 %v607, %v610
    %v612 = vrot.slane %v611, 4
    %v614 = vshll.u32 %v450, 16
    %v616 = vrot.slane %v614, 5
    %v617 = vsel %vm50, %v612, %v616
    %v619 = vshrl.u32 %v443, 16
    %v621 = vrot.slane %v619, 4
    %v622 = vshll.u32 %v443, 16
    %v624 = vrot.slane %v622, 5
    %v625 = vor.u32 %v621, %v624
    %v626 = vrot.slane %v625, 4
    %v628 = vshll.u32 %v451, 16
    %v630 = vrot.slane %v628, 5
    %v631 = vsel %vm50, %v626, %v630
    %v633 = vshrl.u32 %v444, 16
    %v635 = vrot.slane %v633, 4
    %v636 = vshll.u32 %v444, 16
    %v638 = vrot.slane %v636, 5
    %v639 = vor.u32 %v635, %v638
    %v640 = vrot.slane %v639, 4
    %v642 = vshll.u32 %v452, 16
    %v644 = vrot.slane %v642, 5
    %v645 = vsel %vm50, %v640, %v644
    %v647 = vshrl.u32 %v445, 16
    %v649 = vrot.slane %v647, 4
    %v650 = vshll.u32 %v445, 16
    %v652 = vrot.slane %v650, 5
    %v653 = vor.u32 %v649, %v652
    %v654 = vrot.slane %v653, 4
    %v656 = vshll.u32 %v453, 16
    %v658 = vrot.slane %v656, 5
    %v659 = vsel %vm50, %v654, %v658
    %v660 = vld [vmem:[%s462 + $0x10] sm:$0xf]
    %v661 = vld [vmem:[%s462 + $0x14] sm:$0xf]
    %v662 = vld [vmem:[%s462 + $0x18] sm:$0xf]
    %v663 = vld [vmem:[%s462 + $0x1c] sm:$0xf]
    %v664 = vunpack.c.l.b16 %v561
    %v665 = vunpack.c.l.b16 %v575
    %v666 = vunpack.c.l.b16 %v589
    %v667 = vunpack.c.l.b16 %v603
    %v668 = vunpack.c.l.b16 %v617
    %v669 = vunpack.c.l.b16 %v631
    %v670 = vunpack.c.l.b16 %v645
    %v671 = vunpack.c.l.b16 %v659
    %v672 = vpack.c.b16 %v665, %v664
    %v673 = vpack.c.b16 %v667, %v666
    %v674 = vpack.c.b16 %v669, %v668
    %v675 = vpack.c.b16 %v671, %v670
    %v680 = vunpack.c.l.b16 %v660
    %v681 = vunpack.c.l.b16 %v661
    %v682 = vunpack.c.l.b16 %v662
    %v683 = vunpack.c.l.b16 %v663
    %v684 = vpack.c.b16 %v681, %v680
    %v685 = vpack.c.b16 %v683, %v682
    %v689 = vsel %vm191, %v672, 0
    %v692 = vsel %vm191, %v673, 0
    %v695 = vsel %vm191, %v674, 0
    %v698 = vsel %vm191, %v675, 0
    %700 = vmatpush.bf16.msra.mxu0 0
    %701 = vmatpush.bf16.msra.mxu0 0
    %702 = vmatpush.bf16.msra.mxu0 0
    %703 = vmatpush.bf16.msra.mxu0 0
    %704 = vmatpush.bf16.msra.mxu0 0
    %705 = vmatpush.bf16.msra.mxu0 0
    %706 = vmatpush.bf16.msra.mxu0 %v685
    %707 = vmatpush.bf16.msra.mxu0 %v684
    %708 = vmatmul.bf16.gmra.mxu0 %v689
    %v709 = vpop.f32.mrf.mxu0
    %v710 = vadd.f32 0.0, %v709
    %v711 = vpop.f32.mrf.mxu0
    %v712 = vadd.f32 0.0, %v711
    %713 = vmatmul.bf16.gmra.mxu0 %v692
    %v714 = vpop.f32.mrf.mxu0
    %v715 = vadd.f32 0.0, %v714
    %v716 = vpop.f32.mrf.mxu0
    %v717 = vadd.f32 0.0, %v716
    %718 = vmatmul.bf16.gmra.mxu0 %v695
    %v719 = vpop.f32.mrf.mxu0
    %v720 = vadd.f32 0.0, %v719
    %v721 = vpop.f32.mrf.mxu0
    %v722 = vadd.f32 0.0, %v721
    %723 = vmatmul.bf16.gmra.mxu0 %v698
    %v724 = vpop.f32.mrf.mxu0
    %v725 = vadd.f32 0.0, %v724
    %v726 = vpop.f32.mrf.mxu0
    %v727 = vadd.f32 0.0, %v726
    %728 = vdwg.mxu0
    %v729 = vadd.f32 %v540, %v710
    %v730 = vadd.f32 %v541, %v712
    %v731 = vadd.f32 %v542, %v715
    %v732 = vadd.f32 %v543, %v717
    %v733 = vadd.f32 %v544, %v720
    %v734 = vadd.f32 %v545, %v722
    %v735 = vadd.f32 %v546, %v725
    %v736 = vadd.f32 %v547, %v727
    %v753 = vrot.slane %v454, 5
    %v754 = vrot.slane %v753, 4
    %v755 = vrot.slane %v446, 5
    %v756 = vsel %vm324, %v754, %v755
    %v757 = vrot.slane %v455, 5
    %v758 = vrot.slane %v757, 4
    %v759 = vrot.slane %v447, 5
    %v760 = vsel %vm324, %v758, %v759
    %v761 = vrot.slane %v456, 5
    %v762 = vrot.slane %v761, 4
    %v763 = vrot.slane %v448, 5
    %v764 = vsel %vm324, %v762, %v763
    %v765 = vrot.slane %v457, 5
    %v766 = vrot.slane %v765, 4
    %v767 = vrot.slane %v449, 5
    %v768 = vsel %vm324, %v766, %v767
    %v769 = vrot.slane %v458, 5
    %v770 = vrot.slane %v769, 4
    %v771 = vrot.slane %v450, 5
    %v772 = vsel %vm324, %v770, %v771
    %v773 = vrot.slane %v459, 5
    %v774 = vrot.slane %v773, 4
    %v775 = vrot.slane %v451, 5
    %v776 = vsel %vm324, %v774, %v775
    %v777 = vrot.slane %v460, 5
    %v778 = vrot.slane %v777, 4
    %v779 = vrot.slane %v452, 5
    %v780 = vsel %vm324, %v778, %v779
    %v781 = vrot.slane %v461, 5
    %v782 = vrot.slane %v781, 4
    %v783 = vrot.slane %v453, 5
    %v784 = vsel %vm324, %v782, %v783
    %v785 = vld [vmem:[%s462 + $0x20] sm:$0xf]
    %v786 = vld [vmem:[%s462 + $0x24] sm:$0xf]
    %v787 = vld [vmem:[%s462 + $0x28] sm:$0xf]
    %v788 = vld [vmem:[%s462 + $0x2c] sm:$0xf]
    %v789 = vunpack.c.l.b16 %v756
    %v790 = vunpack.c.l.b16 %v760
    %v791 = vunpack.c.l.b16 %v764
    %v792 = vunpack.c.l.b16 %v768
    %v793 = vunpack.c.l.b16 %v772
    %v794 = vunpack.c.l.b16 %v776
    %v795 = vunpack.c.l.b16 %v780
    %v796 = vunpack.c.l.b16 %v784
    %v797 = vpack.c.b16 %v790, %v789
    %v798 = vpack.c.b16 %v792, %v791
    %v799 = vpack.c.b16 %v794, %v793
    %v800 = vpack.c.b16 %v796, %v795
    %v805 = vunpack.c.l.b16 %v785
    %v806 = vunpack.c.l.b16 %v786
    %v807 = vunpack.c.l.b16 %v787
    %v808 = vunpack.c.l.b16 %v788
    %v809 = vpack.c.b16 %v806, %v805
    %v810 = vpack.c.b16 %v808, %v807
    %v814 = vsel %vm191, %v797, 0
    %v817 = vsel %vm191, %v798, 0
    %v820 = vsel %vm191, %v799, 0
    %v823 = vsel %vm191, %v800, 0
    %825 = vmatpush.bf16.msra.mxu0 0
    %826 = vmatpush.bf16.msra.mxu0 0
    %827 = vmatpush.bf16.msra.mxu0 0
    %828 = vmatpush.bf16.msra.mxu0 0
    %829 = vmatpush.bf16.msra.mxu0 0
    %830 = vmatpush.bf16.msra.mxu0 0
    %831 = vmatpush.bf16.msra.mxu0 %v810
    %832 = vmatpush.bf16.msra.mxu0 %v809
    %833 = vmatmul.bf16.gmra.mxu0 %v814
    %v834 = vpop.f32.mrf.mxu0
    %v835 = vadd.f32 0.0, %v834
    %v836 = vpop.f32.mrf.mxu0
    %v837 = vadd.f32 0.0, %v836
    %838 = vmatmul.bf16.gmra.mxu0 %v817
    %v839 = vpop.f32.mrf.mxu0
    %v840 = vadd.f32 0.0, %v839
    %v841 = vpop.f32.mrf.mxu0
    %v842 = vadd.f32 0.0, %v841
    %843 = vmatmul.bf16.gmra.mxu0 %v820
    %v844 = vpop.f32.mrf.mxu0
    %v845 = vadd.f32 0.0, %v844
    %v846 = vpop.f32.mrf.mxu0
    %v847 = vadd.f32 0.0, %v846
    %848 = vmatmul.bf16.gmra.mxu0 %v823
    %v849 = vpop.f32.mrf.mxu0
    %v850 = vadd.f32 0.0, %v849
    %v851 = vpop.f32.mrf.mxu0
    %v852 = vadd.f32 0.0, %v851
    %853 = vdwg.mxu0
    %v854 = vadd.f32 %v729, %v835
    %v855 = vadd.f32 %v730, %v837
    %v856 = vadd.f32 %v731, %v840
    %v857 = vadd.f32 %v732, %v842
    %v858 = vadd.f32 %v733, %v845
    %v859 = vadd.f32 %v734, %v847
    %v860 = vadd.f32 %v735, %v850
    %v861 = vadd.f32 %v736, %v852
    %s862 = sadd.s32 %s16, 2
    %s863 = smul.u32 %s862, 2
    %s864 = smul.addr %s863, 4
    %s865 = scalar_lea.vmem %s0, %s864
    %v866 = vld [vmem:[%s865] sm:$0xf]
    %v867 = vld [vmem:[%s865 + $0x8] sm:$0xf]
    %v868 = vld [vmem:[%s865 + $0x10] sm:$0xf]
    %v869 = vld [vmem:[%s865 + $0x18] sm:$0xf]
    %v870 = vld [vmem:[%s865 + $0x20] sm:$0xf]
    %v871 = vld [vmem:[%s865 + $0x28] sm:$0xf]
    %v872 = vld [vmem:[%s865 + $0x30] sm:$0xf]
    %v873 = vld [vmem:[%s865 + $0x38] sm:$0xf]
    %v874 = vld [vmem:[%s865 + $0x4] sm:$0x1]
    %v875 = vld [vmem:[%s865 + $0xc] sm:$0x1]
    %v876 = vld [vmem:[%s865 + $0x14] sm:$0x1]
    %v877 = vld [vmem:[%s865 + $0x1c] sm:$0x1]
    %v878 = vld [vmem:[%s865 + $0x24] sm:$0x1]
    %v879 = vld [vmem:[%s865 + $0x2c] sm:$0x1]
    %v880 = vld [vmem:[%s865 + $0x34] sm:$0x1]
    %v881 = vld [vmem:[%s865 + $0x3c] sm:$0x1]
    %v882 = vld [vmem:[%s865] sm:$0xe]
    %v883 = vld [vmem:[%s865 + $0x8] sm:$0xe]
    %v884 = vld [vmem:[%s865 + $0x10] sm:$0xe]
    %v885 = vld [vmem:[%s865 + $0x18] sm:$0xe]
    %v886 = vld [vmem:[%s865 + $0x20] sm:$0xe]
    %v887 = vld [vmem:[%s865 + $0x28] sm:$0xe]
    %v888 = vld [vmem:[%s865 + $0x30] sm:$0xe]
    %v889 = vld [vmem:[%s865 + $0x38] sm:$0xe]
    %s890 = scalar_lea.vmem %s1, 96
    %v891 = vld [vmem:[%s890] sm:$0xf]
    %v892 = vld [vmem:[%s890 + $0x4] sm:$0xf]
    %v893 = vld [vmem:[%s890 + $0x8] sm:$0xf]
    %v894 = vld [vmem:[%s890 + $0xc] sm:$0xf]
    %v903 = vunpack.c.l.b16 %v866
    %v904 = vunpack.c.l.b16 %v867
    %v905 = vunpack.c.l.b16 %v868
    %v906 = vunpack.c.l.b16 %v869
    %v907 = vunpack.c.l.b16 %v870
    %v908 = vunpack.c.l.b16 %v871
    %v909 = vunpack.c.l.b16 %v872
    %v910 = vunpack.c.l.b16 %v873
    %v911 = vpack.c.b16 %v904, %v903
    %v912 = vpack.c.b16 %v906, %v905
    %v913 = vpack.c.b16 %v908, %v907
    %v914 = vpack.c.b16 %v910, %v909
    %v919 = vunpack.c.l.b16 %v891
    %v920 = vunpack.c.l.b16 %v892
    %v921 = vunpack.c.l.b16 %v893
    %v922 = vunpack.c.l.b16 %v894
    %v923 = vpack.c.b16 %v920, %v919
    %v924 = vpack.c.b16 %v922, %v921
    %v928 = vsel %vm191, %v911, 0
    %v931 = vsel %vm191, %v912, 0
    %v934 = vsel %vm191, %v913, 0
    %v937 = vsel %vm191, %v914, 0
    %939 = vmatpush.bf16.msra.mxu0 0
    %940 = vmatpush.bf16.msra.mxu0 0
    %941 = vmatpush.bf16.msra.mxu0 0
    %942 = vmatpush.bf16.msra.mxu0 0
    %943 = vmatpush.bf16.msra.mxu0 0
    %944 = vmatpush.bf16.msra.mxu0 0
    %945 = vmatpush.bf16.msra.mxu0 %v924
    %946 = vmatpush.bf16.msra.mxu0 %v923
    %947 = vmatmul.bf16.gmra.mxu0 %v928
    %v948 = vpop.f32.mrf.mxu0
    %v949 = vadd.f32 0.0, %v948
    %v950 = vpop.f32.mrf.mxu0
    %v951 = vadd.f32 0.0, %v950
    %952 = vmatmul.bf16.gmra.mxu0 %v931
    %v953 = vpop.f32.mrf.mxu0
    %v954 = vadd.f32 0.0, %v953
    %v955 = vpop.f32.mrf.mxu0
    %v956 = vadd.f32 0.0, %v955
    %957 = vmatmul.bf16.gmra.mxu0 %v934
    %v958 = vpop.f32.mrf.mxu0
    %v959 = vadd.f32 0.0, %v958
    %v960 = vpop.f32.mrf.mxu0
    %v961 = vadd.f32 0.0, %v960
    %962 = vmatmul.bf16.gmra.mxu0 %v937
    %v963 = vpop.f32.mrf.mxu0
    %v964 = vadd.f32 0.0, %v963
    %v965 = vpop.f32.mrf.mxu0
    %v966 = vadd.f32 0.0, %v965
    %967 = vdwg.mxu0
    %v968 = vadd.f32 %v854, %v949
    %v969 = vadd.f32 %v855, %v951
    %v970 = vadd.f32 %v856, %v954
    %v971 = vadd.f32 %v857, %v956
    %v972 = vadd.f32 %v858, %v959
    %v973 = vadd.f32 %v859, %v961
    %v974 = vadd.f32 %v860, %v964
    %v975 = vadd.f32 %v861, %v966
    %v977 = vshrl.u32 %v866, 16
    %v979 = vrot.slane %v977, 4
    %v980 = vshll.u32 %v866, 16
    %v982 = vrot.slane %v980, 5
    %v983 = vor.u32 %v979, %v982
    %v984 = vrot.slane %v983, 4
    %v986 = vshll.u32 %v874, 16
    %v988 = vrot.slane %v986, 5
    %v989 = vsel %vm50, %v984, %v988
    %v991 = vshrl.u32 %v867, 16
    %v993 = vrot.slane %v991, 4
    %v994 = vshll.u32 %v867, 16
    %v996 = vrot.slane %v994, 5
    %v997 = vor.u32 %v993, %v996
    %v998 = vrot.slane %v997, 4
    %v1000 = vshll.u32 %v875, 16
    %v1002 = vrot.slane %v1000, 5
    %v1003 = vsel %vm50, %v998, %v1002
    %v1005 = vshrl.u32 %v868, 16
    %v1007 = vrot.slane %v1005, 4
    %v1008 = vshll.u32 %v868, 16
    %v1010 = vrot.slane %v1008, 5
    %v1011 = vor.u32 %v1007, %v1010
    %v1012 = vrot.slane %v1011, 4
    %v1014 = vshll.u32 %v876, 16
    %v1016 = vrot.slane %v1014, 5
    %v1017 = vsel %vm50, %v1012, %v1016
    %v1019 = vshrl.u32 %v869, 16
    %v1021 = vrot.slane %v1019, 4
    %v1022 = vshll.u32 %v869, 16
    %v1024 = vrot.slane %v1022, 5
    %v1025 = vor.u32 %v1021, %v1024
    %v1026 = vrot.slane %v1025, 4
    %v1028 = vshll.u32 %v877, 16
    %v1030 = vrot.slane %v1028, 5
    %v1031 = vsel %vm50, %v1026, %v1030
    %v1033 = vshrl.u32 %v870, 16
    %v1035 = vrot.slane %v1033, 4
    %v1036 = vshll.u32 %v870, 16
    %v1038 = vrot.slane %v1036, 5
    %v1039 = vor.u32 %v1035, %v1038
    %v1040 = vrot.slane %v1039, 4
    %v1042 = vshll.u32 %v878, 16
    %v1044 = vrot.slane %v1042, 5
    %v1045 = vsel %vm50, %v1040, %v1044
    %v1047 = vshrl.u32 %v871, 16
    %v1049 = vrot.slane %v1047, 4
    %v1050 = vshll.u32 %v871, 16
    %v1052 = vrot.slane %v1050, 5
    %v1053 = vor.u32 %v1049, %v1052
    %v1054 = vrot.slane %v1053, 4
    %v1056 = vshll.u32 %v879, 16
    %v1058 = vrot.slane %v1056, 5
    %v1059 = vsel %vm50, %v1054, %v1058
    %v1061 = vshrl.u32 %v872, 16
    %v1063 = vrot.slane %v1061, 4
    %v1064 = vshll.u32 %v872, 16
    %v1066 = vrot.slane %v1064, 5
    %v1067 = vor.u32 %v1063, %v1066
    %v1068 = vrot.slane %v1067, 4
    %v1070 = vshll.u32 %v880, 16
    %v1072 = vrot.slane %v1070, 5
    %v1073 = vsel %vm50, %v1068, %v1072
    %v1075 = vshrl.u32 %v873, 16
    %v1077 = vrot.slane %v1075, 4
    %v1078 = vshll.u32 %v873, 16
    %v1080 = vrot.slane %v1078, 5
    %v1081 = vor.u32 %v1077, %v1080
    %v1082 = vrot.slane %v1081, 4
    %v1084 = vshll.u32 %v881, 16
    %v1086 = vrot.slane %v1084, 5
    %v1087 = vsel %vm50, %v1082, %v1086
    %v1088 = vld [vmem:[%s890 + $0x10] sm:$0xf]
    %v1089 = vld [vmem:[%s890 + $0x14] sm:$0xf]
    %v1090 = vld [vmem:[%s890 + $0x18] sm:$0xf]
    %v1091 = vld [vmem:[%s890 + $0x1c] sm:$0xf]
    %v1092 = vunpack.c.l.b16 %v989
    %v1093 = vunpack.c.l.b16 %v1003
    %v1094 = vunpack.c.l.b16 %v1017
    %v1095 = vunpack.c.l.b16 %v1031
    %v1096 = vunpack.c.l.b16 %v1045
    %v1097 = vunpack.c.l.b16 %v1059
    %v1098 = vunpack.c.l.b16 %v1073
    %v1099 = vunpack.c.l.b16 %v1087
    %v1100 = vpack.c.b16 %v1093, %v1092
    %v1101 = vpack.c.b16 %v1095, %v1094
    %v1102 = vpack.c.b16 %v1097, %v1096
    %v1103 = vpack.c.b16 %v1099, %v1098
    %v1108 = vunpack.c.l.b16 %v1088
    %v1109 = vunpack.c.l.b16 %v1089
    %v1110 = vunpack.c.l.b16 %v1090
    %v1111 = vunpack.c.l.b16 %v1091
    %v1112 = vpack.c.b16 %v1109, %v1108
    %v1113 = vpack.c.b16 %v1111, %v1110
    %v1117 = vsel %vm191, %v1100, 0
    %v1120 = vsel %vm191, %v1101, 0
    %v1123 = vsel %vm191, %v1102, 0
    %v1126 = vsel %vm191, %v1103, 0
    %1128 = vmatpush.bf16.msra.mxu0 0
    %1129 = vmatpush.bf16.msra.mxu0 0
    %1130 = vmatpush.bf16.msra.mxu0 0
    %1131 = vmatpush.bf16.msra.mxu0 0
    %1132 = vmatpush.bf16.msra.mxu0 0
    %1133 = vmatpush.bf16.msra.mxu0 0
    %1134 = vmatpush.bf16.msra.mxu0 %v1113
    %1135 = vmatpush.bf16.msra.mxu0 %v1112
    %1136 = vmatmul.bf16.gmra.mxu0 %v1117
    %v1137 = vpop.f32.mrf.mxu0
    %v1138 = vadd.f32 0.0, %v1137
    %v1139 = vpop.f32.mrf.mxu0
    %v1140 = vadd.f32 0.0, %v1139
    %1141 = vmatmul.bf16.gmra.mxu0 %v1120
    %v1142 = vpop.f32.mrf.mxu0
    %v1143 = vadd.f32 0.0, %v1142
    %v1144 = vpop.f32.mrf.mxu0
    %v1145 = vadd.f32 0.0, %v1144
    %1146 = vmatmul.bf16.gmra.mxu0 %v1123
    %v1147 = vpop.f32.mrf.mxu0
    %v1148 = vadd.f32 0.0, %v1147
    %v1149 = vpop.f32.mrf.mxu0
    %v1150 = vadd.f32 0.0, %v1149
    %1151 = vmatmul.bf16.gmra.mxu0 %v1126
    %v1152 = vpop.f32.mrf.mxu0
    %v1153 = vadd.f32 0.0, %v1152
    %v1154 = vpop.f32.mrf.mxu0
    %v1155 = vadd.f32 0.0, %v1154
    %1156 = vdwg.mxu0
    %v1157 = vadd.f32 %v968, %v1138
    %v1158 = vadd.f32 %v969, %v1140
    %v1159 = vadd.f32 %v970, %v1143
    %v1160 = vadd.f32 %v971, %v1145
    %v1161 = vadd.f32 %v972, %v1148
    %v1162 = vadd.f32 %v973, %v1150
    %v1163 = vadd.f32 %v974, %v1153
    %v1164 = vadd.f32 %v975, %v1155
    %v1181 = vrot.slane %v882, 5
    %v1182 = vrot.slane %v1181, 4
    %v1183 = vrot.slane %v874, 5
    %v1184 = vsel %vm324, %v1182, %v1183
    %v1185 = vrot.slane %v883, 5
    %v1186 = vrot.slane %v1185, 4
    %v1187 = vrot.slane %v875, 5
    %v1188 = vsel %vm324, %v1186, %v1187
    %v1189 = vrot.slane %v884, 5
    %v1190 = vrot.slane %v1189, 4
    %v1191 = vrot.slane %v876, 5
    %v1192 = vsel %vm324, %v1190, %v1191
    %v1193 = vrot.slane %v885, 5
    %v1194 = vrot.slane %v1193, 4
    %v1195 = vrot.slane %v877, 5
    %v1196 = vsel %vm324, %v1194, %v1195
    %v1197 = vrot.slane %v886, 5
    %v1198 = vrot.slane %v1197, 4
    %v1199 = vrot.slane %v878, 5
    %v1200 = vsel %vm324, %v1198, %v1199
    %v1201 = vrot.slane %v887, 5
    %v1202 = vrot.slane %v1201, 4
    %v1203 = vrot.slane %v879, 5
    %v1204 = vsel %vm324, %v1202, %v1203
    %v1205 = vrot.slane %v888, 5
    %v1206 = vrot.slane %v1205, 4
    %v1207 = vrot.slane %v880, 5
    %v1208 = vsel %vm324, %v1206, %v1207
    %v1209 = vrot.slane %v889, 5
    %v1210 = vrot.slane %v1209, 4
    %v1211 = vrot.slane %v881, 5
    %v1212 = vsel %vm324, %v1210, %v1211
    %v1213 = vld [vmem:[%s890 + $0x20] sm:$0xf]
    %v1214 = vld [vmem:[%s890 + $0x24] sm:$0xf]
    %v1215 = vld [vmem:[%s890 + $0x28] sm:$0xf]
    %v1216 = vld [vmem:[%s890 + $0x2c] sm:$0xf]
    %v1217 = vunpack.c.l.b16 %v1184
    %v1218 = vunpack.c.l.b16 %v1188
    %v1219 = vunpack.c.l.b16 %v1192
    %v1220 = vunpack.c.l.b16 %v1196
    %v1221 = vunpack.c.l.b16 %v1200
    %v1222 = vunpack.c.l.b16 %v1204
    %v1223 = vunpack.c.l.b16 %v1208
    %v1224 = vunpack.c.l.b16 %v1212
    %v1225 = vpack.c.b16 %v1218, %v1217
    %v1226 = vpack.c.b16 %v1220, %v1219
    %v1227 = vpack.c.b16 %v1222, %v1221
    %v1228 = vpack.c.b16 %v1224, %v1223
    %v1233 = vunpack.c.l.b16 %v1213
    %v1234 = vunpack.c.l.b16 %v1214
    %v1235 = vunpack.c.l.b16 %v1215
    %v1236 = vunpack.c.l.b16 %v1216
    %v1237 = vpack.c.b16 %v1234, %v1233
    %v1238 = vpack.c.b16 %v1236, %v1235
    %v1242 = vsel %vm191, %v1225, 0
    %v1245 = vsel %vm191, %v1226, 0
    %v1248 = vsel %vm191, %v1227, 0
    %v1251 = vsel %vm191, %v1228, 0
    %1253 = vmatpush.bf16.msra.mxu0 0
    %1254 = vmatpush.bf16.msra.mxu0 0
    %1255 = vmatpush.bf16.msra.mxu0 0
    %1256 = vmatpush.bf16.msra.mxu0 0
    %1257 = vmatpush.bf16.msra.mxu0 0
    %1258 = vmatpush.bf16.msra.mxu0 0
    %1259 = vmatpush.bf16.msra.mxu0 %v1238
    %1260 = vmatpush.bf16.msra.mxu0 %v1237
    %1261 = vmatmul.bf16.gmra.mxu0 %v1242
    %v1262 = vpop.f32.mrf.mxu0
    %v1263 = vadd.f32 0.0, %v1262
    %v1264 = vpop.f32.mrf.mxu0
    %v1265 = vadd.f32 0.0, %v1264
    %1266 = vmatmul.bf16.gmra.mxu0 %v1245
    %v1267 = vpop.f32.mrf.mxu0
    %v1268 = vadd.f32 0.0, %v1267
    %v1269 = vpop.f32.mrf.mxu0
    %v1270 = vadd.f32 0.0, %v1269
    %1271 = vmatmul.bf16.gmra.mxu0 %v1248
    %v1272 = vpop.f32.mrf.mxu0
    %v1273 = vadd.f32 0.0, %v1272
    %v1274 = vpop.f32.mrf.mxu0
    %v1275 = vadd.f32 0.0, %v1274
    %1276 = vmatmul.bf16.gmra.mxu0 %v1251
    %v1277 = vpop.f32.mrf.mxu0
    %v1278 = vadd.f32 0.0, %v1277
    %v1279 = vpop.f32.mrf.mxu0
    %v1280 = vadd.f32 0.0, %v1279
    %1281 = vdwg.mxu0
    %v1282 = vadd.f32 %v1157, %v1263
    %v1283 = vadd.f32 %v1158, %v1265
    %v1284 = vadd.f32 %v1159, %v1268
    %v1285 = vadd.f32 %v1160, %v1270
    %v1286 = vadd.f32 %v1161, %v1273
    %v1287 = vadd.f32 %v1162, %v1275
    %v1288 = vadd.f32 %v1163, %v1278
    %v1289 = vadd.f32 %v1164, %v1280
    %v1290 = vld [vmem:[%s2] sm:$0x1]
    %v1292 = vperm.slane %v1290, 0
    %v1294 = vadd.f32 %v1282, %v1292
    %v1295 = vadd.f32 %v1283, %v1292
    %v1296 = vadd.f32 %v1284, %v1292
    %v1297 = vadd.f32 %v1285, %v1292
    %v1298 = vadd.f32 %v1286, %v1292
    %v1299 = vadd.f32 %v1287, %v1292
    %v1300 = vadd.f32 %v1288, %v1292
    %v1301 = vadd.f32 %v1289, %v1292
    %vm1302 = vcmask 523264
    %1303 = vst.msk [vmem:[#allocation2] sm:$0xff] %vm1302, %v1294
    %1304 = vst.msk [vmem:[#allocation2 + $0x8] sm:$0xff] %vm1302, %v1295
    %1305 = vst.msk [vmem:[#allocation2 + $0x10] sm:$0xff] %vm1302, %v1296
    %1306 = vst.msk [vmem:[#allocation2 + $0x18] sm:$0xff] %vm1302, %v1297
    %1307 = vst.msk [vmem:[#allocation2 + $0x20] sm:$0xff] %vm1302, %v1298
    %1308 = vst.msk [vmem:[#allocation2 + $0x28] sm:$0xff] %vm1302, %v1299
    %1309 = vst.msk [vmem:[#allocation2 + $0x30] sm:$0xff] %vm1302, %v1300
    %1310 = vst.msk [vmem:[#allocation2 + $0x38] sm:$0xff] %vm1302, %v1301
    // Predicated region
    $region14: #{tpu_custom_call.1} parent=1 // pred_check
      _
    $region15: #{tpu_custom_call.1} parent=1 // pred_check_branch
      %1312 = sbr.rel (0) target = $region17
    $region16: #{tpu_custom_call.1} parent=1 // pred_region
      %1314 = vsyncadd [#allocation3], 0
      %s1315 = sshll.u32 [#allocation2], 4
      %s1316 = int_to_ptr.vmem [resolvable:$true] %s1315
      %s1317 = sshll.u32 %s3, 4
      %s1318 = int_to_ptr.hbm [resolvable:$true] %s1317
      %1323 = dma.vmem_to_hbm [thread:$0]  %s1316, 1024, %s1318, [#allocation3], 128, 128, 8
    $region17: #{tpu_custom_call.1} parent=1 // pred_fallthru
      _
    // Predicated region
    $region18: #{tpu_custom_call.1} parent=1 // pred_check
      _
    $region19: #{tpu_custom_call.1} parent=1 // pred_check_branch
      %1325 = sbr.rel (0) target = $region21
    $region20: #{tpu_custom_call.1} parent=1 // pred_region
      %1327 = dma.done [#allocation3], 1024
    $region21: #{tpu_custom_call.1} parent=1 // pred_fallthru
      _
    %1328 = vsyncpa [#allocation3], 1

</llo_original>
